<compile_context>
chip_gen: v6e
topology: v6e:2x2x1
jax: 0.10.0
libtpu: 0.0.40
codegen_flags: <defaults>
</compile_context>

<pallas_src>
import math
import functools

import jax
import jax.numpy as jnp
from jax.experimental import pallas as pl
from jax.experimental.pallas import tpu as pltpu


def _round_up(x, m):
    return (x + m - 1) // m * m


def _fourier_kernel(x_ref, w_ref, b_ref, o_ref):
    # x_ref: (block_b, f_in)    VMEM tile of the input
    # w_ref: (f_in, out_pad)    pre-transposed, 2*pi-scaled, duplicated weight
    # b_ref: (1, out_pad)       phase bias: pi/2 for the cos half, 0 for sin half
    # o_ref: (block_b, out_pad) output tile (lane-dense, multiple of 128 wide)
    f = jnp.dot(x_ref[...], w_ref[...], preferred_element_type=jnp.float32)
    # cos(t) = sin(t + pi/2): single full-width transcendental + one store.
    o_ref[...] = jnp.sin(f + b_ref[...]).astype(o_ref.dtype)


def _choose_block_b(B, f_in, out_pad, vmem_tile_budget_bytes=12 * 1024 * 1024):
    """Largest multiple-of-8 batch tile that fits double-buffered in VMEM,
    with at least 2 grid steps when the batch is big enough (v7x megacore)."""
    per_row_bytes = 2 * (f_in + out_pad) * 4  # double-buffered in + out tiles, f32
    budget_rows = max(8, (vmem_tile_budget_bytes // per_row_bytes) // 8 * 8)
    cap = min(budget_rows, 4096)
    if B >= 16:
        # Ensure >= 2 grid iterations so both v7x TensorCores get work.
        block_b = min(cap, _round_up(pl.cdiv(B, 2), 8))
    else:
        # Small batch: one whole-array tile (satisfies the (8,128) rule).
        block_b = B
    return block_b


@functools.partial(jax.jit, static_argnames=("block_b",))
def fourier_features(x, weight, *, block_b=None):
    """Pallas implementation of FourierFeatures.forward.

    x:      [B, in_features] float32
    weight: [out_features//2, in_features] float32
    returns [B, out_features] float32
    """
    B, f_in = x.shape
    half, f_in2 = weight.shape
    assert f_in == f_in2
    out_features = 2 * half
    out_pad = _round_up(out_features, 128)

    if block_b is None:
        block_b = _choose_block_b(B, f_in, out_pad)

    # One-time (O(half * f_in)) weight prep, amortized over every batch tile:
    # pre-transpose, fold in 2*pi, duplicate for [cos | sin], pad lanes to 128x.
    w_t = weight.T * (2.0 * math.pi)                      # [f_in, half]
    w2 = jnp.concatenate([w_t, w_t], axis=1)              # [f_in, 2*half]
    bias = jnp.concatenate(
        [jnp.full((half,), 0.5 * math.pi, jnp.float32),   # cos half: sin(t+pi/2)
         jnp.zeros((half,), jnp.float32)]                 # sin half
    )
    if out_pad > out_features:
        w2 = jnp.pad(w2, ((0, 0), (0, out_pad - out_features)))
        bias = jnp.pad(bias, (0, out_pad - out_features))
    bias = bias.reshape(1, out_pad)

    grid = (pl.cdiv(B, block_b),)
    out = pl.pallas_call(
        _fourier_kernel,
        out_shape=jax.ShapeDtypeStruct((B, out_pad), jnp.float32),
        grid=grid,
        in_specs=[
            pl.BlockSpec((block_b, f_in), lambda i: (i, 0)),
            pl.BlockSpec((f_in, out_pad), lambda i: (0, 0)),
            pl.BlockSpec((1, out_pad), lambda i: (0, 0)),
        ],
        out_specs=pl.BlockSpec((block_b, out_pad), lambda i: (i, 0)),
        compiler_params=pltpu.CompilerParams(
            dimension_semantics=("parallel",)
        ),
    )(x, w2, bias)

    if out_pad > out_features:
        out = out[:, :out_features]
    return out


def fourier_features_ref(x, weight):
    f = 2.0 * math.pi * (x @ weight.T)
    return jnp.concatenate([jnp.cos(f), jnp.sin(f)], axis=-1)


if __name__ == "__main__":
    # Deterministic params / inputs (synthetic; no checkpoint load).
    in_features = 4
    out_features = 32   # must be even; half = 16
    std = 1.0
    batch = 8

    key = jax.random.PRNGKey(0)
    k_w, k_x = jax.random.split(key)
    weight = jax.random.normal(
        k_w, (out_features // 2, in_features), dtype=jnp.float32
    ) * std
    x = jax.random.normal(k_x, (batch, in_features), dtype=jnp.float32)

    out = fourier_features(x, weight)
    out = jax.block_until_ready(out)

    ref = fourier_features_ref(x, weight)
    assert out.shape == (batch, out_features)
    assert jnp.allclose(out, ref, atol=1e-5, rtol=1e-5), "mismatch vs reference"

    # Also exercise a multi-tile grid (B not a multiple of the block, B >= 16).
    x_big = jax.random.normal(jax.random.PRNGKey(1), (300, in_features), jnp.float32)
    out_big = jax.block_until_ready(fourier_features(x_big, weight))
    ref_big = fourier_features_ref(x_big, weight)
    assert jnp.allclose(out_big, ref_big, atol=1e-5, rtol=1e-5), "mismatch (big)"

    print("KERNEL_OK")
</pallas_src>

<mosaic_0001>
module attributes {stable_mosaic.version = 11 : i64} {
  func.func @_fourier_kernel(%arg0: i32, %arg1: memref<8x4xf32, #tpu.memory_space<vmem>>, %arg2: memref<4x128xf32, #tpu.memory_space<vmem>>, %arg3: memref<1x128xf32, #tpu.memory_space<vmem>>, %arg4: memref<8x128xf32, #tpu.memory_space<vmem>>) attributes {dimension_semantics = [#tpu.dimension_semantics<parallel>], iteration_bounds = array<i64: 1>, scalar_prefetch = 0 : i64, scratch_operands = 0 : i64, tpu.core_type = #tpu.core_type<tc>, window_params = [{transform_indices = @transform_0, window_bounds = array<i64: 8, 4>}, {pipeline_mode = #tpu.pipeline_mode<synchronous>, transform_indices = @transform_1, window_bounds = array<i64: 4, 128>}, {pipeline_mode = #tpu.pipeline_mode<synchronous>, transform_indices = @transform_2, window_bounds = array<i64: 1, 128>}, {transform_indices = @transform_3, window_bounds = array<i64: 8, 128>}]} {
    %c0 = arith.constant 0 : index
    %c0_0 = arith.constant 0 : index
    %0 = vector.load %arg1[%c0, %c0_0] : memref<8x4xf32, #tpu.memory_space<vmem>>, vector<8x4xf32>
    %c0_1 = arith.constant 0 : index
    %c0_2 = arith.constant 0 : index
    %1 = vector.load %arg2[%c0_1, %c0_2] : memref<4x128xf32, #tpu.memory_space<vmem>>, vector<4x128xf32>
    %cst = arith.constant dense<0.000000e+00> : vector<8x128xf32>
    %2 = tpu.matmul %0, %1, %cst {dimension_numbers = #tpu.dot_dimension_numbers<[1], [0], [0], [1], [0, 0, 1, 1], [], []>} : vector<8x4xf32>, vector<4x128xf32>, vector<8x128xf32> -> vector<8x128xf32>
    %c0_3 = arith.constant 0 : index
    %c0_4 = arith.constant 0 : index
    %3 = vector.load %arg3[%c0_3, %c0_4] : memref<1x128xf32, #tpu.memory_space<vmem>>, vector<1x128xf32>
    %4 = vector.broadcast %3 : vector<1x128xf32> to vector<8x128xf32>
    %5 = arith.addf %2, %4 : vector<8x128xf32>
    %6 = math.sin %5 : vector<8x128xf32>
    %c0_5 = arith.constant 0 : index
    %c0_6 = arith.constant 0 : index
    %7 = vector.load %arg4[%c0_5, %c0_6] : memref<8x128xf32, #tpu.memory_space<vmem>>, vector<8x128xf32>
    tpu.vector_store %arg4[%c0_5, %c0_6], %6 {strides = array<i32>} : memref<8x128xf32, #tpu.memory_space<vmem>>, vector<8x128xf32>,
    return
  }
  func.func @transform_0(%arg0: i32) -> (i32, i32) {
    %c0_i32 = arith.constant 0 : i32
    %c0_i32_0 = arith.constant 0 : i32
    return %arg0, %c0_i32 : i32, i32
  }
  func.func @transform_1(%arg0: i32) -> (i32, i32) {
    %c0_i32 = arith.constant 0 : i32
    %c0_i32_0 = arith.constant 0 : i32
    %c0_i32_1 = arith.constant 0 : i32
    return %c0_i32, %c0_i32_0 : i32, i32
  }
  func.func @transform_2(%arg0: i32) -> (i32, i32) {
    %c0_i32 = arith.constant 0 : i32
    %c0_i32_0 = arith.constant 0 : i32
    %c0_i32_1 = arith.constant 0 : i32
    return %c0_i32, %c0_i32_0 : i32, i32
  }
  func.func @transform_3(%arg0: i32) -> (i32, i32) {
    %c0_i32 = arith.constant 0 : i32
    %c0_i32_0 = arith.constant 0 : i32
    return %arg0, %c0_i32 : i32, i32
  }
}

</mosaic_0001>

<llo_original>
// kernel: fourier_features.1
$region0: #{fourier_features.1}
  #allocation0 [shape = 'u32[]', space=smem, size = 0x4, offset = 0x4, fixed_abs, tag = 'smem constant byte address 0x4 - core index']
  #allocation1 [shape = 'u32[144,128]{1,0:T(1,128)}', space=vmem, size = 0x12000, scoped, tag = 'internal scratch']
  %s0 = inlined_call_operand.vmem [shape: f32[8,4], index: 0, kind: input, shape index: {}]
  %s1 = inlined_call_operand.vmem [shape: f32[4,128], index: 1, kind: input, shape index: {}]
  %s2 = inlined_call_operand.vmem [shape: f32[1,128], index: 2, kind: input, shape index: {}]
  %s3 = inlined_call_operand.hbm [shape: f32[8,128], index: 3, kind: output, shape index: {}]
  %s4 = sld [smem:[#allocation0]]
  $region22: #{fourier_features.1} parent=0
    _
  %s6 = ssub.s32 1, %s4
  %s7 = scalar_select 0, %s6, %s4
  $region1: #{fourier_features.1} parent=0
    #allocation2 [shape = 'u8[4096]{0}', space=vmem, size = 0x1000, scoped, tag = 'output window, operand 0, single buffered']
    #allocation3 [shape = 's32[1]{0}', space=sflag, size = 0x4, scoped, tag = 'scoped memory for fourier_features.1']
    %8 = vsyncpa [#allocation3], 0
    // Predicated region
    $region2: #{fourier_features.1} parent=1 // pred_check
      _
    $region3: #{fourier_features.1} parent=1 // pred_check_branch
      %10 = sbr.rel (0) target = $region5
    $region4: #{fourier_features.1} parent=1 // pred_region
      _
    $region5: #{fourier_features.1} parent=1 // pred_fallthru
      _
    // Predicated region
    $region6: #{fourier_features.1} parent=1 // pred_check
      _
    $region7: #{fourier_features.1} parent=1 // pred_check_branch
      %12 = sbr.rel (0) target = $region9
    $region8: #{fourier_features.1} parent=1 // pred_region
      _
    $region9: #{fourier_features.1} parent=1 // pred_fallthru
      _
    // Predicated region
    $region10: #{fourier_features.1} parent=1 // pred_check
      _
    $region11: #{fourier_features.1} parent=1 // pred_check_branch
      %14 = sbr.rel (0) target = $region13
    $region12: #{fourier_features.1} parent=1 // pred_region
      _
    $region13: #{fourier_features.1} parent=1 // pred_fallthru
      _
    %v15 = vld [vmem:[%s0] sm:$0xff]
    %v16 = vld [vmem:[%s1] sm:$0xf]
    %v17 = vld [vmem:[%s2] sm:$0x1]
    %v19 = vlaneseq
    %v20 = vshrl.u32 %v19, 7
    %v21 = vsub.s32 0, %v20
    %v22 = vrot.slane %v17, %v21
    %vm24 = vcmask 31744
    %v26 = vsel %vm24, %v15, 0
    %vm28 = vcmask 1043456
    %v30 = vsel %vm28, %v16, 0
    %32 = vmatprep.subr.mxu0 0.0
    %33 = vmatpush1.msra.mxu0 0.0
    %34 = vmatprep.subr.mxu0 0.0
    %35 = vmatpush1.msra.mxu0 0.0
    %36 = vmatprep.subr.mxu0 0.0
    %37 = vmatpush1.msra.mxu0 0.0
    %38 = vmatprep.subr.mxu0 0.0
    %39 = vmatpush1.msra.mxu0 0.0
    %40 = vmatprep.subr.mxu0 0.0
    %41 = vmatpush1.msra.mxu0 0.0
    %42 = vmatprep.subr.mxu0 0.0
    %43 = vmatpush1.msra.mxu0 0.0
    %44 = vmatprep.subr.mxu0 0.0
    %45 = vmatpush1.msra.mxu0 0.0
    %46 = vmatprep.subr.mxu0 0.0
    %47 = vmatpush1.msra.mxu0 0.0
    %48 = vmatprep.subr.mxu0 0.0
    %49 = vmatpush1.msra.mxu0 0.0
    %50 = vmatprep.subr.mxu0 0.0
    %51 = vmatpush1.msra.mxu0 0.0
    %52 = vmatprep.subr.mxu0 0.0
    %53 = vmatpush1.msra.mxu0 0.0
    %54 = vmatprep.subr.mxu0 0.0
    %55 = vmatpush1.msra.mxu0 0.0
    %56 = vmatprep.subr.mxu0 0.0
    %57 = vmatpush1.msra.mxu0 0.0
    %58 = vmatprep.subr.mxu0 0.0
    %59 = vmatpush1.msra.mxu0 0.0
    %60 = vmatprep.subr.mxu0 0.0
    %61 = vmatpush1.msra.mxu0 0.0
    %62 = vmatprep.subr.mxu0 0.0
    %63 = vmatpush1.msra.mxu0 %v30
    %64 = vmatprep.subr.mxu0 0.0
    %65 = vmatpush2.msra.mxu0 0.0
    %66 = vmatprep.subr.mxu0 0.0
    %67 = vmatpush2.msra.mxu0 0.0
    %68 = vmatprep.subr.mxu0 0.0
    %69 = vmatpush2.msra.mxu0 0.0
    %70 = vmatprep.subr.mxu0 0.0
    %71 = vmatpush2.msra.mxu0 0.0
    %72 = vmatprep.subr.mxu0 0.0
    %73 = vmatpush2.msra.mxu0 0.0
    %74 = vmatprep.subr.mxu0 0.0
    %75 = vmatpush2.msra.mxu0 0.0
    %76 = vmatprep.subr.mxu0 0.0
    %77 = vmatpush2.msra.mxu0 0.0
    %78 = vmatprep.subr.mxu0 0.0
    %79 = vmatpush2.msra.mxu0 0.0
    %80 = vmatprep.subr.mxu0 0.0
    %81 = vmatpush2.msra.mxu0 0.0
    %82 = vmatprep.subr.mxu0 0.0
    %83 = vmatpush2.msra.mxu0 0.0
    %84 = vmatprep.subr.mxu0 0.0
    %85 = vmatpush2.msra.mxu0 0.0
    %86 = vmatprep.subr.mxu0 0.0
    %87 = vmatpush2.msra.mxu0 0.0
    %88 = vmatprep.subr.mxu0 0.0
    %89 = vmatpush2.msra.mxu0 0.0
    %90 = vmatprep.subr.mxu0 0.0
    %91 = vmatpush2.msra.mxu0 0.0
    %92 = vmatprep.subr.mxu0 0.0
    %93 = vmatpush2.msra.mxu0 0.0
    %94 = vmatprep.subr.mxu0 0.0
    %95 = vmatpush2.msra.mxu0 0.0
    %96 = vmatprep.mubr.f32.mxu0 0.0
    %97 = vmatmul.mubr.f32.gmra.mxu0 %v26
    %v98 = vpop.f32.mrf.mxu0
    %v99 = vadd.f32 %v22, %v98
    %v100 = vpop.f32.mrf.mxu0
    %101 = vdwg.mxu0
    %v102 = vand.u32 2147483647, %v99
    %vm103 = vcmp.le.f32.partialorder %v102, 0.7853982
    %vm104 = vcmp.lt.s32.totalorder %v99, 0
    %v105 = vand.u32 %v99, 2139095040
    %v106 = vshrl.u32 %v105, 23
    %v107 = vsub.s32 %v106, 127
    %v108 = vand.u32 2147483647, %v99
    %v109 = vand.u32 %v108, 8388607
    %v110 = vor.u32 %v109, 8388608
    %v111 = vsub.s32 0, %v110
    %v112 = vadd.s32 %v107, 1
    %vm113 = vcmp.gt.s32.totalorder %v112, 0
    %v114 = vsel %vm113, %v112, 0
    %v115 = vshrl.u32 %v114, 5
    %v116 = vand.u32 %v114, 31
    %v117 = vsub.s32 32, %v116
    %v118 = vshrl.u32 683565275, %v117
    %v119 = vshll.u32 683565275, %v116
    %v120 = vshrl.u32 2475754826, %v117
    %v121 = vor.u32 %v119, %v120
    %v122 = vshll.u32 2475754826, %v116
    %v123 = vshrl.u32 2131351028, %v117
    %v124 = vor.u32 %v122, %v123
    %v125 = vshll.u32 2131351028, %v116
    %v126 = vshrl.u32 2102212464, %v117
    %v127 = vor.u32 %v125, %v126
    %v128 = vshll.u32 2102212464, %v116
    %v129 = vshrl.u32 920167782, %v117
    %v130 = vor.u32 %v128, %v129
    %v131 = vshll.u32 920167782, %v116
    %v132 = vshrl.u32 1326507024, %v117
    %v133 = vor.u32 %v131, %v132
    %vm134 = vcmp.lt.s32.totalorder %v115, 1
    %vm135 = vcmp.lt.s32.totalorder %v115, 2
    %vm136 = vcmp.lt.s32.totalorder %v115, 3
    %vm137 = vcmp.lt.s32.totalorder %v115, 4
    %v138 = vsel %vm134, %v118, %v121
    %v139 = vsel %vm137, %v127, 2102212464
    %v140 = vsel %vm136, %v124, %v139
    %v141 = vsel %vm135, %v138, %v140
    %v142 = vsel %vm134, %v121, %v124
    %v143 = vsel %vm137, %v130, 920167782
    %v144 = vsel %vm136, %v127, %v143
    %v145 = vsel %vm135, %v142, %v144
    %v146 = vsel %vm134, %v124, %v127
    %v147 = vsel %vm137, %v133, 1326507024
    %v148 = vsel %vm136, %v130, %v147
    %v149 = vsel %vm135, %v146, %v148
    %v150 = vshll.u32 %v110, 8
    %v151 = vmul.u32.u64.compose %v150, %v149
    %v152 = vextract.low.u32 %v151
    %v153 = vextract.high.u32 %v151
    %v154 = vmul.u32.u64.compose %v150, %v145
    %v155 = vextract.low.u32 %v154
    %v156 = vextract.high.u32 %v154
    %v157 = vmul.u32 %v150, %v141
    %v158 = vadd.s32 %v153, %v155
    %vm159 = vc.u32 %v153, %v155
    %v160 = vadd.s32 %v156, 1
    %v161 = vsel %vm159, %v160, %v156
    %v162 = vadd.s32 %v157, %v161
    %v163 = vadd.s32 %v162, 536870912
    %v164 = vshrl.u32 %v163, 30
    %v165 = vshll.u32 %v164, 30
    %v166 = vsub.s32 %v162, %v165
    %vm167 = vcmp.lt.s32.totalorder %v166, 0
    %v168 = vsub.s32 0, %v166
    %v169 = vsel %vm167, %v168, %v166
    %v170 = vclz %v169
    %v171 = vsub.s32 %v170, 2
    %vm172 = vcmp.gt.s32.totalorder 0, %v171
    %v173 = vsel %vm172, 0, %v171
    %v174 = vsub.s32 32, %v173
    %v175 = vshll.u32 %v166, %v173
    %v176 = vshrl.u32 %v158, %v174
    %v177 = vor.u32 %v175, %v176
    %v178 = vsub.s32 4294967266, %v173
    %v179 = vadd.s32 %v178, 127
    %v180 = vshll.u32 %v179, 23
    %v181 = vor.u32 4788187, %v180
    %v182 = vand.u32 2147483647, %v181
    %v184 = vcvt.s32.f32 %v177
    %v185 = vmul.f32 %v184, %v182
    %v186 = vxor.u32 %v185, 2147483648
    %v187 = vsel %vm104, %v186, %v185
    %v188 = vsub.s32 4, %v164
    %v189 = vsel %vm104, %v188, %v164
    %v190 = vsel %vm103, %v99, %v187
    %v191 = vsel %vm103, 0, %v189
    %v192 = vcosq.f32.pop %v190
    %v193 = vsinq.f32.pop %v190
    %vm194 = vweird.f32 %v99
    %v195 = vadd.s32 %v191, 3
    %v196 = vand.u32 %v195, 3
    %vm197 = vcmp.lt.s32.totalorder %v196, 2
    %vm198 = vcmp.eq.s32.totalorder %v196, 0
    %v199 = vxor.u32 %v193, 2147483648
    %v200 = vsel %vm198, %v192, %v199
    %vm201 = vcmp.eq.s32.totalorder %v196, 2
    %v202 = vxor.u32 %v192, 2147483648
    %v203 = vsel %vm201, %v202, %v193
    %v204 = vsel %vm197, %v200, %v203
    %v205 = vsel %vm194, nan, %v204
    %206 = vst [vmem:[#allocation2] sm:$0xff] %v205
    // Predicated region
    $region14: #{fourier_features.1} parent=1 // pred_check
      _
    $region15: #{fourier_features.1} parent=1 // pred_check_branch
      %208 = sbr.rel (0) target = $region17
    $region16: #{fourier_features.1} parent=1 // pred_region
      %s210 = ssub.s32 128, 128
      %211 = vsyncadd [#allocation3], %s210
      %s213 = sshll.u32 [#allocation2], 4
      %s214 = int_to_ptr.vmem [resolvable:$true] %s213
      %216 = dma.vmem_to_hbm [thread:$0]  %s214, 128, %s3, [#allocation3]
    $region17: #{fourier_features.1} parent=1 // pred_fallthru
      _
    // Predicated region
    $region18: #{fourier_features.1} parent=1 // pred_check
      _
    $region19: #{fourier_features.1} parent=1 // pred_check_branch
      %218 = sbr.rel (0) target = $region21
    $region20: #{fourier_features.1} parent=1 // pred_region
      %219 = dma.done [#allocation3], 128
    $region21: #{fourier_features.1} parent=1 // pred_fallthru
      _
    %220 = vsyncpa [#allocation3], 1

</llo_original>
